<compile_context>
chip_gen: v5e
topology: v5e:2x2
jax: 0.10.0
libtpu: 0.0.40
codegen_flags: <defaults>
</compile_context>

<pallas_src>
import jax
import jax.numpy as jnp
import numpy as np
from jax.experimental import pallas as pl
from jax.experimental.pallas import tpu as pltpu

C, KH, KW = 2, 2, 2   # channels / kernel size of ConvTranspose2d(2, 2, 2, groups=2)


def dwconvt_kernel(wvec_ref, bvec_ref, x_ref, o_ref):
    """Depthwise 2x2 transposed conv on a lane-dense tile.

    wvec_ref: VMEM (KH*KW, nt) f32  per-lane weights, row k = (ki*KW + kj)
    bvec_ref: VMEM (1, nt)     f32  per-lane bias
    x_ref   : VMEM (H, W, nt)       input tile   (lane dim = batch*channels)
    o_ref   : VMEM (OH, OW, nt)     output tile  (OH = H+1, OW = W+1)
    """
    H, W, nt = x_ref.shape
    OH, OW = o_ref.shape[0], o_ref.shape[1]

    xt = x_ref[...].astype(jnp.float32)                       # single input read
    wv = wvec_ref[...].astype(jnp.float32)                    # (4, nt)
    bias = bvec_ref[...].astype(jnp.float32).reshape(1, 1, nt)

    w00 = wv[0, :].reshape(1, 1, nt)   # (ki=0, kj=0)
    w01 = wv[1, :].reshape(1, 1, nt)   # (ki=0, kj=1)
    w10 = wv[2, :].reshape(1, 1, nt)   # (ki=1, kj=0)
    w11 = wv[3, :].reshape(1, 1, nt)   # (ki=1, kj=1)

    # Scatter along H: H is a leading (untiled) dim, so zero-extension is a
    # trivial leading-dim concatenate (no sublane/lane data movement).
    zrow = jnp.zeros((1, W, nt), dtype=jnp.float32)

    def h_scatter(top, bot):
        # rows [0:H] get `top`, rows [1:H+1] get `bot`  ->  (OH, W, nt)
        return (jnp.concatenate([top, zrow], axis=0)
                + jnp.concatenate([zrow, bot], axis=0))

    p0 = h_scatter(xt * w00, xt * w10)   # kj=0 contributions -> output cols [0, W)
    p1 = h_scatter(xt * w01, xt * w11)   # kj=1 contributions -> output cols [1, W]

    # Scatter along W (sublane dim): shift p1 one column toward higher ow with a
    # zero fill at column 0, using roll (XLU) + an iota mask (VPU select).
    col = jax.lax.broadcasted_iota(jnp.int32, (OH, W, nt), 1)
    p1_shift = jnp.where(col >= 1, pltpu.roll(p1, shift=1, axis=1), 0.0)

    # Two sublane-aligned window stores cover the OW = W+1 output columns.
    o_ref[:, 0:W, :] = (bias + p0 + p1_shift).astype(o_ref.dtype)      # cols [0, W)
    o_ref[:, W:OW, :] = (bias + p1[:, W - 1:W, :]).astype(o_ref.dtype)  # col W


def _pick_tile_n(N, H, W, itemsize, budget_bytes=24 * 1024 * 1024):
    """Pick the lane-tile size along N = B*C.

    Multiples of 128 when N allows it, keeping the double-buffered per-step
    footprint under `budget_bytes` (v7x has 64 MiB VMEM/TC; v5e's scoped default
    is only 16 MiB, so we also raise vmem_limit_bytes at the pallas_call).
    Prefers >= 4 grid tiles so v7x's two TensorCores each get pipelined work.
    """
    OH, OW = H + KH - 1, W + KW - 1
    if N % 128 != 0:
        # Small / ragged N: a single lane tile (footprint is tiny for small N;
        # for 16x16 spatial even N ~ 10k still fits comfortably in VMEM).
        return N
    per_lane = (2 * H * W * itemsize        # input block, double-buffered
                + 2 * OH * OW * itemsize    # output block, double-buffered
                + 6 * OH * OW * 4)          # f32 register working set headroom
    cap = max(128, (budget_bytes // per_lane) // 128 * 128)
    if N >= 4 * 128:
        cap = min(cap, max(128, (N // 4) // 128 * 128))   # >= 4 grid tiles
    nt = min(cap, N)
    while N % nt != 0:                       # must divide N exactly
        nt -= 128
    return max(nt, 128)


def grouped_conv_transpose2d(x, weight, bias, *, tile_n=None):
    """x: (B, C, H, W); weight: (C, KH, KW); bias: (C,).

    Returns the module output: (B, C*(H+KH-1)*(W+KW-1)).
    """
    B, Cc, H, W = x.shape
    assert Cc == C
    OH, OW = H + KH - 1, W + KW - 1
    N = B * Cc

    # Lane-dense re-layout (wrapper-side plumbing): trailing dim = B*C, W on
    # sublanes, H leading. lane n = b*C + c.
    x_t = jnp.transpose(x, (2, 3, 0, 1)).reshape(H, W, N)

    # Per-lane weight rows (k = ki*KW + kj) and bias; channel of lane n is n % C.
    wvec = jnp.tile(weight.reshape(Cc, KH * KW).T.astype(jnp.float32), (1, B))  # (4, N)
    bvec = jnp.tile(bias.astype(jnp.float32), B).reshape(1, N)                  # (1, N)

    nt = tile_n if tile_n is not None else _pick_tile_n(N, H, W, x.dtype.itemsize)
    assert N % nt == 0 and (nt == N or nt % 128 == 0)
    grid = (N // nt,)

    cost = pl.CostEstimate(
        flops=8 * N * OH * OW,          # 4 taps * (mul + add) per output element
        transcendentals=0,
        bytes_accessed=(x_t.size * x_t.dtype.itemsize
                        + N * OH * OW * x.dtype.itemsize
                        + (wvec.size + bvec.size) * 4))

    out_t = pl.pallas_call(
        dwconvt_kernel,
        out_shape=jax.ShapeDtypeStruct((OH, OW, N), x.dtype),
        grid=grid,
        in_specs=[pl.BlockSpec((KH * KW, nt), lambda i: (0, i)),
                  pl.BlockSpec((1, nt), lambda i: (0, i)),
                  pl.BlockSpec((H, W, nt), lambda i: (0, 0, i))],
        out_specs=pl.BlockSpec((OH, OW, nt), lambda i: (0, 0, i)),
        compiler_params=pltpu.CompilerParams(
            dimension_semantics=("parallel",),        # lane tiles independent
            vmem_limit_bytes=48 * 1024 * 1024),       # raise v5e/v6e scoped default, < v7x 64 MiB
        cost_estimate=cost,
    )(wvec, bvec, x_t)

    # Restore module layout: (OH, OW, B, C) -> (B, C, OH, OW) -> (B, C*OH*OW).
    out = jnp.transpose(out_t.reshape(OH, OW, B, Cc), (2, 3, 0, 1))
    return out.reshape(B, Cc * OH * OW)


def _reference(x, weight, bias):
    """Vectorized numpy reference for a grouped (depthwise) ConvTranspose2d."""
    x = np.asarray(x, dtype=np.float32)
    w = np.asarray(weight, dtype=np.float32)
    b = np.asarray(bias, dtype=np.float32)
    B, Cc, H, W = x.shape
    OH, OW = H + KH - 1, W + KW - 1
    out = np.zeros((B, Cc, OH, OW), dtype=np.float32)
    out += b[None, :, None, None]
    for ki in range(KH):
        for kj in range(KW):
            out[:, :, ki:ki + H, kj:kj + W] += x * w[None, :, ki, kj, None, None]
    return out.reshape(B, Cc * OH * OW)


if __name__ == "__main__":
    key = jax.random.PRNGKey(0)
    kx, kw, kb = jax.random.split(key, 3)

    # Small shapes consistent with the module: NCHW, C must be 2.
    B, H, W = 4, 16, 16
    x = jax.random.normal(kx, (B, C, H, W), dtype=jnp.float32)

    # Synthetic parameters of ConvTranspose2d(2, 2, 2, groups=2):
    # weight (C, out_per_group=1, KH, KW) squeezed to (C, KH, KW); bias (C,).
    weight = jax.random.normal(kw, (C, KH, KW), dtype=jnp.float32) * 0.5
    bias = jax.random.normal(kb, (C,), dtype=jnp.float32) * 0.1

    out = jax.block_until_ready(grouped_conv_transpose2d(x, weight, bias))

    ref = _reference(x, weight, bias)
    np.testing.assert_allclose(np.asarray(out), ref, rtol=1e-5, atol=1e-5)

    print("KERNEL_OK")
</pallas_src>

<mosaic_0001>
module attributes {stable_mosaic.version = 11 : i64} {
  func.func @dwconvt_kernel(%arg0: i32, %arg1: memref<4x8xf32, #tpu.memory_space<vmem>>, %arg2: memref<1x8xf32, #tpu.memory_space<vmem>>, %arg3: memref<16x16x8xf32, #tpu.memory_space<vmem>>, %arg4: memref<17x17x8xf32, #tpu.memory_space<vmem>>) attributes {dimension_semantics = [#tpu.dimension_semantics<parallel>], iteration_bounds = array<i64: 1>, scalar_prefetch = 0 : i64, scratch_operands = 0 : i64, tpu.core_type = #tpu.core_type<tc>, window_params = [{transform_indices = @transform_0, window_bounds = array<i64: 4, 8>}, {transform_indices = @transform_1, window_bounds = array<i64: 1, 8>}, {transform_indices = @transform_2, window_bounds = array<i64: 16, 16, 8>}, {transform_indices = @transform_3, window_bounds = array<i64: 17, 17, 8>}]} {
    %c0 = arith.constant 0 : index
    %c0_0 = arith.constant 0 : index
    %c0_1 = arith.constant 0 : index
    %0 = vector.load %arg3[%c0, %c0_0, %c0_1] : memref<16x16x8xf32, #tpu.memory_space<vmem>>, vector<16x16x8xf32>
    %c0_2 = arith.constant 0 : index
    %c0_3 = arith.constant 0 : index
    %1 = vector.load %arg1[%c0_2, %c0_3] : memref<4x8xf32, #tpu.memory_space<vmem>>, vector<4x8xf32>
    %c0_4 = arith.constant 0 : index
    %c0_5 = arith.constant 0 : index
    %2 = vector.load %arg2[%c0_4, %c0_5] : memref<1x8xf32, #tpu.memory_space<vmem>>, vector<1x8xf32>
    %3 = vector.shape_cast %2 : vector<1x8xf32> to vector<1x1x8xf32>
    %4 = vector.extract_strided_slice %1 {offsets = [0, 0], sizes = [1, 8], strides = [1, 1]} : vector<4x8xf32> to vector<1x8xf32>
    %5 = vector.shape_cast %4 : vector<1x8xf32> to vector<8xf32>
    %6 = vector.shape_cast %5 : vector<8xf32> to vector<1x1x8xf32>
    %7 = vector.extract_strided_slice %1 {offsets = [1, 0], sizes = [1, 8], strides = [1, 1]} : vector<4x8xf32> to vector<1x8xf32>
    %8 = vector.shape_cast %7 : vector<1x8xf32> to vector<8xf32>
    %9 = vector.shape_cast %8 : vector<8xf32> to vector<1x1x8xf32>
    %10 = vector.extract_strided_slice %1 {offsets = [2, 0], sizes = [1, 8], strides = [1, 1]} : vector<4x8xf32> to vector<1x8xf32>
    %11 = vector.shape_cast %10 : vector<1x8xf32> to vector<8xf32>
    %12 = vector.shape_cast %11 : vector<8xf32> to vector<1x1x8xf32>
    %13 = vector.extract_strided_slice %1 {offsets = [3, 0], sizes = [1, 8], strides = [1, 1]} : vector<4x8xf32> to vector<1x8xf32>
    %14 = vector.shape_cast %13 : vector<1x8xf32> to vector<8xf32>
    %15 = vector.shape_cast %14 : vector<8xf32> to vector<1x1x8xf32>
    %cst = arith.constant 0.000000e+00 : f32
    %16 = vector.broadcast %cst : f32 to vector<1x16x8xf32>
    %17 = vector.broadcast %6 : vector<1x1x8xf32> to vector<16x16x8xf32>
    %18 = arith.mulf %0, %17 : vector<16x16x8xf32>
    %19 = vector.broadcast %12 : vector<1x1x8xf32> to vector<16x16x8xf32>
    %20 = arith.mulf %0, %19 : vector<16x16x8xf32>
    %21 = tpu.concatenate %18, %16 in 0 : vector<16x16x8xf32>, vector<1x16x8xf32> -> vector<17x16x8xf32>
    %22 = tpu.concatenate %16, %20 in 0 : vector<1x16x8xf32>, vector<16x16x8xf32> -> vector<17x16x8xf32>
    %23 = arith.addf %21, %22 : vector<17x16x8xf32>
    %24 = vector.broadcast %9 : vector<1x1x8xf32> to vector<16x16x8xf32>
    %25 = arith.mulf %0, %24 : vector<16x16x8xf32>
    %26 = vector.broadcast %15 : vector<1x1x8xf32> to vector<16x16x8xf32>
    %27 = arith.mulf %0, %26 : vector<16x16x8xf32>
    %28 = tpu.concatenate %25, %16 in 0 : vector<16x16x8xf32>, vector<1x16x8xf32> -> vector<17x16x8xf32>
    %29 = tpu.concatenate %16, %27 in 0 : vector<1x16x8xf32>, vector<16x16x8xf32> -> vector<17x16x8xf32>
    %30 = arith.addf %28, %29 : vector<17x16x8xf32>
    %31 = tpu.iota {dimensions = array<i32: 1>} : vector<17x16x8xi32>
    %c1_i32 = arith.constant 1 : i32
    %32 = vector.broadcast %c1_i32 : i32 to vector<17x16x8xi32>
    %33 = arith.cmpi sge, %31, %32 : vector<17x16x8xi32>
    %c1_i32_6 = arith.constant 1 : i32
    %34 = tpu.dynamic_rotate %30 by %c1_i32_6 dim 1 : vector<17x16x8xf32>, i32 -> vector<17x16x8xf32>
    %cst_7 = arith.constant 0.000000e+00 : f32
    %35 = vector.broadcast %cst_7 : f32 to vector<17x16x8xf32>
    %36 = arith.select %33, %34, %35 : vector<17x16x8xi1>, vector<17x16x8xf32>
    %37 = vector.broadcast %3 : vector<1x1x8xf32> to vector<17x16x8xf32>
    %38 = arith.addf %37, %23 : vector<17x16x8xf32>
    %39 = arith.addf %38, %36 : vector<17x16x8xf32>
    %c0_8 = arith.constant 0 : index
    %c0_9 = arith.constant 0 : index
    %c0_10 = arith.constant 0 : index
    %40 = vector.load %arg4[%c0_8, %c0_9, %c0_10] : memref<17x17x8xf32, #tpu.memory_space<vmem>>, vector<17x16x8xf32>
    tpu.vector_store %arg4[%c0_8, %c0_9, %c0_10], %39 {strides = array<i32>} : memref<17x17x8xf32, #tpu.memory_space<vmem>>, vector<17x16x8xf32>,
    %41 = vector.extract_strided_slice %30 {offsets = [0, 15, 0], sizes = [17, 1, 8], strides = [1, 1, 1]} : vector<17x16x8xf32> to vector<17x1x8xf32>
    %42 = vector.broadcast %3 : vector<1x1x8xf32> to vector<17x1x8xf32>
    %43 = arith.addf %42, %41 : vector<17x1x8xf32>
    %c0_11 = arith.constant 0 : index
    %c16 = arith.constant 16 : index
    %c0_12 = arith.constant 0 : index
    %44 = vector.load %arg4[%c0_11, %c16, %c0_12] : memref<17x17x8xf32, #tpu.memory_space<vmem>>, vector<17x1x8xf32>
    tpu.vector_store %arg4[%c0_11, %c16, %c0_12], %43 {strides = array<i32>} : memref<17x17x8xf32, #tpu.memory_space<vmem>>, vector<17x1x8xf32>,
    return
  }
  func.func @transform_0(%arg0: i32) -> (i32, i32) {
    %c0_i32 = arith.constant 0 : i32
    %c0_i32_0 = arith.constant 0 : i32
    return %c0_i32, %arg0 : i32, i32
  }
  func.func @transform_1(%arg0: i32) -> (i32, i32) {
    %c0_i32 = arith.constant 0 : i32
    %c0_i32_0 = arith.constant 0 : i32
    return %c0_i32, %arg0 : i32, i32
  }
  func.func @transform_2(%arg0: i32) -> (i32, i32, i32) {
    %c0_i32 = arith.constant 0 : i32
    %c0_i32_0 = arith.constant 0 : i32
    %c0_i32_1 = arith.constant 0 : i32
    return %c0_i32, %c0_i32_0, %arg0 : i32, i32, i32
  }
  func.func @transform_3(%arg0: i32) -> (i32, i32, i32) {
    %c0_i32 = arith.constant 0 : i32
    %c0_i32_0 = arith.constant 0 : i32
    %c0_i32_1 = arith.constant 0 : i32
    return %c0_i32, %c0_i32_0, %arg0 : i32, i32, i32
  }
}

</mosaic_0001>

<llo_original>
// kernel: tpu_custom_call.1
$region0: #{tpu_custom_call.1}
  #allocation0 [shape = 'u32[]', space=smem, size = 0x4, offset = 0x4, fixed_abs, tag = 'smem constant byte address 0x4 - core index']
  #allocation1 [shape = 'u32[72,128]{1,0:T(1,128)}', space=vmem, size = 0x9000, scoped, tag = 'internal scratch']
  %s0 = inlined_call_operand.vmem [shape: f32[4,8], index: 0, kind: input, shape index: {}]
  %s1 = inlined_call_operand.vmem [shape: f32[1,8], index: 1, kind: input, shape index: {}]
  %s2 = inlined_call_operand.vmem [shape: f32[16,16,8], index: 2, kind: input, shape index: {}]
  %s3 = inlined_call_operand.vmem [shape: f32[17,17,8], index: 3, kind: output, shape index: {}]
  %s4 = sld [smem:[#allocation0]]
  $region22: #{tpu_custom_call.1} parent=0
    _
  %s6 = ssub.s32 1, %s4
  %s7 = scalar_select 0, %s6, %s4
  // Predicated region
  $region2: #{tpu_custom_call.1} parent=0 // pred_check
    _
  $region3: #{tpu_custom_call.1} parent=0 // pred_check_branch
    %9 = sbr.rel (0) target = $region5
  $region4: #{tpu_custom_call.1} parent=0 // pred_region
    _
  $region5: #{tpu_custom_call.1} parent=0 // pred_fallthru
    _
  // Predicated region
  $region6: #{tpu_custom_call.1} parent=0 // pred_check
    _
  $region7: #{tpu_custom_call.1} parent=0 // pred_check_branch
    %11 = sbr.rel (0) target = $region9
  $region8: #{tpu_custom_call.1} parent=0 // pred_region
    _
  $region9: #{tpu_custom_call.1} parent=0 // pred_fallthru
    _
  // Predicated region
  $region10: #{tpu_custom_call.1} parent=0 // pred_check
    _
  $region11: #{tpu_custom_call.1} parent=0 // pred_check_branch
    %13 = sbr.rel (0) target = $region13
  $region12: #{tpu_custom_call.1} parent=0 // pred_region
    _
  $region13: #{tpu_custom_call.1} parent=0 // pred_fallthru
    _
  %v14 = vld [vmem:[%s2] sm:$0xff]
  %v15 = vld [vmem:[%s2 + $0x8] sm:$0xff]
  %v16 = vld [vmem:[%s2 + $0x10] sm:$0xff]
  %v17 = vld [vmem:[%s2 + $0x18] sm:$0xff]
  %v18 = vld [vmem:[%s2 + $0x20] sm:$0xff]
  %v19 = vld [vmem:[%s2 + $0x28] sm:$0xff]
  %v20 = vld [vmem:[%s2 + $0x30] sm:$0xff]
  %v21 = vld [vmem:[%s2 + $0x38] sm:$0xff]
  %v22 = vld [vmem:[%s2 + $0x40] sm:$0xff]
  %v23 = vld [vmem:[%s2 + $0x48] sm:$0xff]
  %v24 = vld [vmem:[%s2 + $0x50] sm:$0xff]
  %v25 = vld [vmem:[%s2 + $0x58] sm:$0xff]
  %v26 = vld [vmem:[%s2 + $0x60] sm:$0xff]
  %v27 = vld [vmem:[%s2 + $0x68] sm:$0xff]
  %v28 = vld [vmem:[%s2 + $0x70] sm:$0xff]
  %v29 = vld [vmem:[%s2 + $0x78] sm:$0xff]
  %v30 = vld [vmem:[%s2 + $0x80] sm:$0xff]
  %v31 = vld [vmem:[%s2 + $0x88] sm:$0xff]
  %v32 = vld [vmem:[%s2 + $0x90] sm:$0xff]
  %v33 = vld [vmem:[%s2 + $0x98] sm:$0xff]
  %v34 = vld [vmem:[%s2 + $0xa0] sm:$0xff]
  %v35 = vld [vmem:[%s2 + $0xa8] sm:$0xff]
  %v36 = vld [vmem:[%s2 + $0xb0] sm:$0xff]
  %v37 = vld [vmem:[%s2 + $0xb8] sm:$0xff]
  %v38 = vld [vmem:[%s2 + $0xc0] sm:$0xff]
  %v39 = vld [vmem:[%s2 + $0xc8] sm:$0xff]
  %v40 = vld [vmem:[%s2 + $0xd0] sm:$0xff]
  %v41 = vld [vmem:[%s2 + $0xd8] sm:$0xff]
  %v42 = vld [vmem:[%s2 + $0xe0] sm:$0xff]
  %v43 = vld [vmem:[%s2 + $0xe8] sm:$0xff]
  %v44 = vld [vmem:[%s2 + $0xf0] sm:$0xff]
  %v45 = vld [vmem:[%s2 + $0xf8] sm:$0xff]
  %v46 = vld [vmem:[%s0] sm:$0xf]
  %v47 = vld [vmem:[%s1] sm:$0x1]
  %v48 = vperm.slane %v46, 0
  %v49 = vmul.f32 %v14, %v48
  %v50 = vmul.f32 %v15, %v48
  %v51 = vmul.f32 %v16, %v48
  %v52 = vmul.f32 %v17, %v48
  %v53 = vmul.f32 %v18, %v48
  %v54 = vmul.f32 %v19, %v48
  %v55 = vmul.f32 %v20, %v48
  %v56 = vmul.f32 %v21, %v48
  %v57 = vmul.f32 %v22, %v48
  %v58 = vmul.f32 %v23, %v48
  %v59 = vmul.f32 %v24, %v48
  %v60 = vmul.f32 %v25, %v48
  %v61 = vmul.f32 %v26, %v48
  %v62 = vmul.f32 %v27, %v48
  %v63 = vmul.f32 %v28, %v48
  %v64 = vmul.f32 %v29, %v48
  %v65 = vmul.f32 %v30, %v48
  %v66 = vmul.f32 %v31, %v48
  %v67 = vmul.f32 %v32, %v48
  %v68 = vmul.f32 %v33, %v48
  %v69 = vmul.f32 %v34, %v48
  %v70 = vmul.f32 %v35, %v48
  %v71 = vmul.f32 %v36, %v48
  %v72 = vmul.f32 %v37, %v48
  %v73 = vmul.f32 %v38, %v48
  %v74 = vmul.f32 %v39, %v48
  %v75 = vmul.f32 %v40, %v48
  %v76 = vmul.f32 %v41, %v48
  %v77 = vmul.f32 %v42, %v48
  %v78 = vmul.f32 %v43, %v48
  %v79 = vmul.f32 %v44, %v48
  %v80 = vmul.f32 %v45, %v48
  %v81 = vperm.slane %v46, 2
  %v82 = vmul.f32 %v14, %v81
  %v83 = vmul.f32 %v15, %v81
  %v84 = vmul.f32 %v16, %v81
  %v85 = vmul.f32 %v17, %v81
  %v86 = vmul.f32 %v18, %v81
  %v87 = vmul.f32 %v19, %v81
  %v88 = vmul.f32 %v20, %v81
  %v89 = vmul.f32 %v21, %v81
  %v90 = vmul.f32 %v22, %v81
  %v91 = vmul.f32 %v23, %v81
  %v92 = vmul.f32 %v24, %v81
  %v93 = vmul.f32 %v25, %v81
  %v94 = vmul.f32 %v26, %v81
  %v95 = vmul.f32 %v27, %v81
  %v96 = vmul.f32 %v28, %v81
  %v97 = vmul.f32 %v29, %v81
  %v98 = vmul.f32 %v30, %v81
  %v99 = vmul.f32 %v31, %v81
  %v100 = vmul.f32 %v32, %v81
  %v101 = vmul.f32 %v33, %v81
  %v102 = vmul.f32 %v34, %v81
  %v103 = vmul.f32 %v35, %v81
  %v104 = vmul.f32 %v36, %v81
  %v105 = vmul.f32 %v37, %v81
  %v106 = vmul.f32 %v38, %v81
  %v107 = vmul.f32 %v39, %v81
  %v108 = vmul.f32 %v40, %v81
  %v109 = vmul.f32 %v41, %v81
  %v110 = vmul.f32 %v42, %v81
  %v111 = vmul.f32 %v43, %v81
  %v112 = vmul.f32 %v44, %v81
  %v113 = vmul.f32 %v45, %v81
  %v114 = vadd.f32 %v49, 0.0
  %v115 = vadd.f32 %v50, 0.0
  %v116 = vadd.f32 %v51, %v82
  %v117 = vadd.f32 %v52, %v83
  %v118 = vadd.f32 %v53, %v84
  %v119 = vadd.f32 %v54, %v85
  %v120 = vadd.f32 %v55, %v86
  %v121 = vadd.f32 %v56, %v87
  %v122 = vadd.f32 %v57, %v88
  %v123 = vadd.f32 %v58, %v89
  %v124 = vadd.f32 %v59, %v90
  %v125 = vadd.f32 %v60, %v91
  %v126 = vadd.f32 %v61, %v92
  %v127 = vadd.f32 %v62, %v93
  %v128 = vadd.f32 %v63, %v94
  %v129 = vadd.f32 %v64, %v95
  %v130 = vadd.f32 %v65, %v96
  %v131 = vadd.f32 %v66, %v97
  %v132 = vadd.f32 %v67, %v98
  %v133 = vadd.f32 %v68, %v99
  %v134 = vadd.f32 %v69, %v100
  %v135 = vadd.f32 %v70, %v101
  %v136 = vadd.f32 %v71, %v102
  %v137 = vadd.f32 %v72, %v103
  %v138 = vadd.f32 %v73, %v104
  %v139 = vadd.f32 %v74, %v105
  %v140 = vadd.f32 %v75, %v106
  %v141 = vadd.f32 %v76, %v107
  %v142 = vadd.f32 %v77, %v108
  %v143 = vadd.f32 %v78, %v109
  %v144 = vadd.f32 %v79, %v110
  %v145 = vadd.f32 %v80, %v111
  %v146 = vadd.f32 %v112, 0.0
  %v147 = vadd.f32 %v113, 0.0
  %v148 = vperm.slane %v46, 1
  %v149 = vmul.f32 %v14, %v148
  %v150 = vmul.f32 %v15, %v148
  %v151 = vmul.f32 %v16, %v148
  %v152 = vmul.f32 %v17, %v148
  %v153 = vmul.f32 %v18, %v148
  %v154 = vmul.f32 %v19, %v148
  %v155 = vmul.f32 %v20, %v148
  %v156 = vmul.f32 %v21, %v148
  %v157 = vmul.f32 %v22, %v148
  %v158 = vmul.f32 %v23, %v148
  %v159 = vmul.f32 %v24, %v148
  %v160 = vmul.f32 %v25, %v148
  %v161 = vmul.f32 %v26, %v148
  %v162 = vmul.f32 %v27, %v148
  %v163 = vmul.f32 %v28, %v148
  %v164 = vmul.f32 %v29, %v148
  %v165 = vmul.f32 %v30, %v148
  %v166 = vmul.f32 %v31, %v148
  %v167 = vmul.f32 %v32, %v148
  %v168 = vmul.f32 %v33, %v148
  %v169 = vmul.f32 %v34, %v148
  %v170 = vmul.f32 %v35, %v148
  %v171 = vmul.f32 %v36, %v148
  %v172 = vmul.f32 %v37, %v148
  %v173 = vmul.f32 %v38, %v148
  %v174 = vmul.f32 %v39, %v148
  %v175 = vmul.f32 %v40, %v148
  %v176 = vmul.f32 %v41, %v148
  %v177 = vmul.f32 %v42, %v148
  %v178 = vmul.f32 %v43, %v148
  %v179 = vmul.f32 %v44, %v148
  %v180 = vmul.f32 %v45, %v148
  %v181 = vperm.slane %v46, 3
  %v182 = vmul.f32 %v14, %v181
  %v183 = vmul.f32 %v15, %v181
  %v184 = vmul.f32 %v16, %v181
  %v185 = vmul.f32 %v17, %v181
  %v186 = vmul.f32 %v18, %v181
  %v187 = vmul.f32 %v19, %v181
  %v188 = vmul.f32 %v20, %v181
  %v189 = vmul.f32 %v21, %v181
  %v190 = vmul.f32 %v22, %v181
  %v191 = vmul.f32 %v23, %v181
  %v192 = vmul.f32 %v24, %v181
  %v193 = vmul.f32 %v25, %v181
  %v194 = vmul.f32 %v26, %v181
  %v195 = vmul.f32 %v27, %v181
  %v196 = vmul.f32 %v28, %v181
  %v197 = vmul.f32 %v29, %v181
  %v198 = vmul.f32 %v30, %v181
  %v199 = vmul.f32 %v31, %v181
  %v200 = vmul.f32 %v32, %v181
  %v201 = vmul.f32 %v33, %v181
  %v202 = vmul.f32 %v34, %v181
  %v203 = vmul.f32 %v35, %v181
  %v204 = vmul.f32 %v36, %v181
  %v205 = vmul.f32 %v37, %v181
  %v206 = vmul.f32 %v38, %v181
  %v207 = vmul.f32 %v39, %v181
  %v208 = vmul.f32 %v40, %v181
  %v209 = vmul.f32 %v41, %v181
  %v210 = vmul.f32 %v42, %v181
  %v211 = vmul.f32 %v43, %v181
  %v212 = vmul.f32 %v44, %v181
  %v213 = vmul.f32 %v45, %v181
  %v214 = vadd.f32 %v149, 0.0
  %v215 = vadd.f32 %v150, 0.0
  %v216 = vadd.f32 %v151, %v182
  %v217 = vadd.f32 %v152, %v183
  %v218 = vadd.f32 %v153, %v184
  %v219 = vadd.f32 %v154, %v185
  %v220 = vadd.f32 %v155, %v186
  %v221 = vadd.f32 %v156, %v187
  %v222 = vadd.f32 %v157, %v188
  %v223 = vadd.f32 %v158, %v189
  %v224 = vadd.f32 %v159, %v190
  %v225 = vadd.f32 %v160, %v191
  %v226 = vadd.f32 %v161, %v192
  %v227 = vadd.f32 %v162, %v193
  %v228 = vadd.f32 %v163, %v194
  %v229 = vadd.f32 %v164, %v195
  %v230 = vadd.f32 %v165, %v196
  %v231 = vadd.f32 %v166, %v197
  %v232 = vadd.f32 %v167, %v198
  %v233 = vadd.f32 %v168, %v199
  %v234 = vadd.f32 %v169, %v200
  %v235 = vadd.f32 %v170, %v201
  %v236 = vadd.f32 %v171, %v202
  %v237 = vadd.f32 %v172, %v203
  %v238 = vadd.f32 %v173, %v204
  %v239 = vadd.f32 %v174, %v205
  %v240 = vadd.f32 %v175, %v206
  %v241 = vadd.f32 %v176, %v207
  %v242 = vadd.f32 %v177, %v208
  %v243 = vadd.f32 %v178, %v209
  %v244 = vadd.f32 %v179, %v210
  %v245 = vadd.f32 %v180, %v211
  %v246 = vadd.f32 %v212, 0.0
  %v247 = vadd.f32 %v213, 0.0
  %v248 = vlaneseq
  %v249 = vshrl.u32 %v248, 7
  %v250 = vadd.s32 %v249, 8
  %vm251 = vcmp.ge.s32.totalorder %v249, 1
  %vm252 = vcmp.ge.s32.totalorder %v250, 1
  %v253 = vrot.slane %v214, 7
  %v254 = vrot.slane %v216, 7
  %v255 = vrot.slane %v218, 7
  %v256 = vrot.slane %v220, 7
  %v257 = vrot.slane %v222, 7
  %v258 = vrot.slane %v224, 7
  %v259 = vrot.slane %v226, 7
  %v260 = vrot.slane %v228, 7
  %v261 = vrot.slane %v230, 7
  %v262 = vrot.slane %v232, 7
  %v263 = vrot.slane %v234, 7
  %v264 = vrot.slane %v236, 7
  %v265 = vrot.slane %v238, 7
  %v266 = vrot.slane %v240, 7
  %v267 = vrot.slane %v242, 7
  %v268 = vrot.slane %v244, 7
  %v269 = vrot.slane %v246, 7
  %v270 = vrot.slane %v215, 7
  %v271 = vrot.slane %v217, 7
  %v272 = vrot.slane %v219, 7
  %v273 = vrot.slane %v221, 7
  %v274 = vrot.slane %v223, 7
  %v275 = vrot.slane %v225, 7
  %v276 = vrot.slane %v227, 7
  %v277 = vrot.slane %v229, 7
  %v278 = vrot.slane %v231, 7
  %v279 = vrot.slane %v233, 7
  %v280 = vrot.slane %v235, 7
  %v281 = vrot.slane %v237, 7
  %v282 = vrot.slane %v239, 7
  %v283 = vrot.slane %v241, 7
  %v284 = vrot.slane %v243, 7
  %v285 = vrot.slane %v245, 7
  %v286 = vrot.slane %v247, 7
  %vm287 = vcmp.lt.s32.totalorder %v249, 1
  %v288 = vsel %vm287, %v253, %v270
  %v289 = vsel %vm287, %v254, %v271
  %v290 = vsel %vm287, %v255, %v272
  %v291 = vsel %vm287, %v256, %v273
  %v292 = vsel %vm287, %v257, %v274
  %v293 = vsel %vm287, %v258, %v275
  %v294 = vsel %vm287, %v259, %v276
  %v295 = vsel %vm287, %v260, %v277
  %v296 = vsel %vm287, %v261, %v278
  %v297 = vsel %vm287, %v262, %v279
  %v298 = vsel %vm287, %v263, %v280
  %v299 = vsel %vm287, %v264, %v281
  %v300 = vsel %vm287, %v265, %v282
  %v301 = vsel %vm287, %v266, %v283
  %v302 = vsel %vm287, %v267, %v284
  %v303 = vsel %vm287, %v268, %v285
  %v304 = vsel %vm287, %v269, %v286
  %v305 = vsel %vm287, %v270, %v253
  %v306 = vsel %vm287, %v271, %v254
  %v307 = vsel %vm287, %v272, %v255
  %v308 = vsel %vm287, %v273, %v256
  %v309 = vsel %vm287, %v274, %v257
  %v310 = vsel %vm287, %v275, %v258
  %v311 = vsel %vm287, %v276, %v259
  %v312 = vsel %vm287, %v277, %v260
  %v313 = vsel %vm287, %v278, %v261
  %v314 = vsel %vm287, %v279, %v262
  %v315 = vsel %vm287, %v280, %v263
  %v316 = vsel %vm287, %v281, %v264
  %v317 = vsel %vm287, %v282, %v265
  %v318 = vsel %vm287, %v283, %v266
  %v319 = vsel %vm287, %v284, %v267
  %v320 = vsel %vm287, %v285, %v268
  %v321 = vsel %vm287, %v286, %v269
  %v322 = vsel %vm251, %v305, 0.0
  %v323 = vsel %vm252, %v288, 0.0
  %v324 = vsel %vm251, %v306, 0.0
  %v325 = vsel %vm252, %v289, 0.0
  %v326 = vsel %vm251, %v307, 0.0
  %v327 = vsel %vm252, %v290, 0.0
  %v328 = vsel %vm251, %v308, 0.0
  %v329 = vsel %vm252, %v291, 0.0
  %v330 = vsel %vm251, %v309, 0.0
  %v331 = vsel %vm252, %v292, 0.0
  %v332 = vsel %vm251, %v310, 0.0
  %v333 = vsel %vm252, %v293, 0.0
  %v334 = vsel %vm251, %v311, 0.0
  %v335 = vsel %vm252, %v294, 0.0
  %v336 = vsel %vm251, %v312, 0.0
  %v337 = vsel %vm252, %v295, 0.0
  %v338 = vsel %vm251, %v313, 0.0
  %v339 = vsel %vm252, %v296, 0.0
  %v340 = vsel %vm251, %v314, 0.0
  %v341 = vsel %vm252, %v297, 0.0
  %v342 = vsel %vm251, %v315, 0.0
  %v343 = vsel %vm252, %v298, 0.0
  %v344 = vsel %vm251, %v316, 0.0
  %v345 = vsel %vm252, %v299, 0.0
  %v346 = vsel %vm251, %v317, 0.0
  %v347 = vsel %vm252, %v300, 0.0
  %v348 = vsel %vm251, %v318, 0.0
  %v349 = vsel %vm252, %v301, 0.0
  %v350 = vsel %vm251, %v319, 0.0
  %v351 = vsel %vm252, %v302, 0.0
  %v352 = vsel %vm251, %v320, 0.0
  %v353 = vsel %vm252, %v303, 0.0
  %v354 = vsel %vm251, %v321, 0.0
  %v355 = vsel %vm252, %v304, 0.0
  %v357 = vperm.slane %v47, 0
  %v359 = vadd.f32 %v357, %v114
  %v360 = vadd.f32 %v357, %v115
  %v361 = vadd.f32 %v357, %v116
  %v362 = vadd.f32 %v357, %v117
  %v363 = vadd.f32 %v357, %v118
  %v364 = vadd.f32 %v357, %v119
  %v365 = vadd.f32 %v357, %v120
  %v366 = vadd.f32 %v357, %v121
  %v367 = vadd.f32 %v357, %v122
  %v368 = vadd.f32 %v357, %v123
  %v369 = vadd.f32 %v357, %v124
  %v370 = vadd.f32 %v357, %v125
  %v371 = vadd.f32 %v357, %v126
  %v372 = vadd.f32 %v357, %v127
  %v373 = vadd.f32 %v357, %v128
  %v374 = vadd.f32 %v357, %v129
  %v375 = vadd.f32 %v357, %v130
  %v376 = vadd.f32 %v357, %v131
  %v377 = vadd.f32 %v357, %v132
  %v378 = vadd.f32 %v357, %v133
  %v379 = vadd.f32 %v357, %v134
  %v380 = vadd.f32 %v357, %v135
  %v381 = vadd.f32 %v357, %v136
  %v382 = vadd.f32 %v357, %v137
  %v383 = vadd.f32 %v357, %v138
  %v384 = vadd.f32 %v357, %v139
  %v385 = vadd.f32 %v357, %v140
  %v386 = vadd.f32 %v357, %v141
  %v387 = vadd.f32 %v357, %v142
  %v388 = vadd.f32 %v357, %v143
  %v389 = vadd.f32 %v357, %v144
  %v390 = vadd.f32 %v357, %v145
  %v391 = vadd.f32 %v357, %v146
  %v392 = vadd.f32 %v357, %v147
  %v393 = vadd.f32 %v359, %v322
  %v394 = vadd.f32 %v360, %v323
  %v395 = vadd.f32 %v361, %v324
  %v396 = vadd.f32 %v362, %v325
  %v397 = vadd.f32 %v363, %v326
  %v398 = vadd.f32 %v364, %v327
  %v399 = vadd.f32 %v365, %v328
  %v400 = vadd.f32 %v366, %v329
  %v401 = vadd.f32 %v367, %v330
  %v402 = vadd.f32 %v368, %v331
  %v403 = vadd.f32 %v369, %v332
  %v404 = vadd.f32 %v370, %v333
  %v405 = vadd.f32 %v371, %v334
  %v406 = vadd.f32 %v372, %v335
  %v407 = vadd.f32 %v373, %v336
  %v408 = vadd.f32 %v374, %v337
  %v409 = vadd.f32 %v375, %v338
  %v410 = vadd.f32 %v376, %v339
  %v411 = vadd.f32 %v377, %v340
  %v412 = vadd.f32 %v378, %v341
  %v413 = vadd.f32 %v379, %v342
  %v414 = vadd.f32 %v380, %v343
  %v415 = vadd.f32 %v381, %v344
  %v416 = vadd.f32 %v382, %v345
  %v417 = vadd.f32 %v383, %v346
  %v418 = vadd.f32 %v384, %v347
  %v419 = vadd.f32 %v385, %v348
  %v420 = vadd.f32 %v386, %v349
  %v421 = vadd.f32 %v387, %v350
  %v422 = vadd.f32 %v388, %v351
  %v423 = vadd.f32 %v389, %v352
  %v424 = vadd.f32 %v390, %v353
  %v425 = vadd.f32 %v391, %v354
  %v426 = vadd.f32 %v392, %v355
  %vm427 = vcmask 64512
  %428 = vst.msk [vmem:[%s3] sm:$0xff] %vm427, %v393
  %429 = vst.msk [vmem:[%s3 + $0x8] sm:$0xff] %vm427, %v394
  %430 = vst.msk [vmem:[%s3 + $0x18] sm:$0xff] %vm427, %v395
  %431 = vst.msk [vmem:[%s3 + $0x20] sm:$0xff] %vm427, %v396
  %432 = vst.msk [vmem:[%s3 + $0x30] sm:$0xff] %vm427, %v397
  %433 = vst.msk [vmem:[%s3 + $0x38] sm:$0xff] %vm427, %v398
  %434 = vst.msk [vmem:[%s3 + $0x48] sm:$0xff] %vm427, %v399
  %435 = vst.msk [vmem:[%s3 + $0x50] sm:$0xff] %vm427, %v400
  %436 = vst.msk [vmem:[%s3 + $0x60] sm:$0xff] %vm427, %v401
  %437 = vst.msk [vmem:[%s3 + $0x68] sm:$0xff] %vm427, %v402
  %438 = vst.msk [vmem:[%s3 + $0x78] sm:$0xff] %vm427, %v403
  %439 = vst.msk [vmem:[%s3 + $0x80] sm:$0xff] %vm427, %v404
  %440 = vst.msk [vmem:[%s3 + $0x90] sm:$0xff] %vm427, %v405
  %441 = vst.msk [vmem:[%s3 + $0x98] sm:$0xff] %vm427, %v406
  %442 = vst.msk [vmem:[%s3 + $0xa8] sm:$0xff] %vm427, %v407
  %443 = vst.msk [vmem:[%s3 + $0xb0] sm:$0xff] %vm427, %v408
  %444 = vst.msk [vmem:[%s3 + $0xc0] sm:$0xff] %vm427, %v409
  %445 = vst.msk [vmem:[%s3 + $0xc8] sm:$0xff] %vm427, %v410
  %446 = vst.msk [vmem:[%s3 + $0xd8] sm:$0xff] %vm427, %v411
  %447 = vst.msk [vmem:[%s3 + $0xe0] sm:$0xff] %vm427, %v412
  %448 = vst.msk [vmem:[%s3 + $0xf0] sm:$0xff] %vm427, %v413
  %449 = vst.msk [vmem:[%s3 + $0xf8] sm:$0xff] %vm427, %v414
  %450 = vst.msk [vmem:[%s3 + $0x108] sm:$0xff] %vm427, %v415
  %451 = vst.msk [vmem:[%s3 + $0x110] sm:$0xff] %vm427, %v416
  %452 = vst.msk [vmem:[%s3 + $0x120] sm:$0xff] %vm427, %v417
  %453 = vst.msk [vmem:[%s3 + $0x128] sm:$0xff] %vm427, %v418
  %454 = vst.msk [vmem:[%s3 + $0x138] sm:$0xff] %vm427, %v419
  %455 = vst.msk [vmem:[%s3 + $0x140] sm:$0xff] %vm427, %v420
  %456 = vst.msk [vmem:[%s3 + $0x150] sm:$0xff] %vm427, %v421
  %457 = vst.msk [vmem:[%s3 + $0x158] sm:$0xff] %vm427, %v422
  %458 = vst.msk [vmem:[%s3 + $0x168] sm:$0xff] %vm427, %v423
  %459 = vst.msk [vmem:[%s3 + $0x170] sm:$0xff] %vm427, %v424
  %460 = vst.msk [vmem:[%s3 + $0x180] sm:$0xff] %vm427, %v425
  %461 = vst.msk [vmem:[%s3 + $0x188] sm:$0xff] %vm427, %v426
  %479 = vst [vmem:[#allocation1] sm:$0xff] %v215
  %s480 = scalar_lea.vmem [#allocation1], 7
  %v481 = vld [vmem:[%s480] ss:$9 sm:$0xff]
  %482 = vst [vmem:[#allocation1] sm:$0xff] %v217
  %v483 = vld [vmem:[%s480] ss:$9 sm:$0xff]
  %484 = vst [vmem:[#allocation1] sm:$0xff] %v219
  %v485 = vld [vmem:[%s480] ss:$9 sm:$0xff]
  %486 = vst [vmem:[#allocation1] sm:$0xff] %v221
  %v487 = vld [vmem:[%s480] ss:$9 sm:$0xff]
  %488 = vst [vmem:[#allocation1] sm:$0xff] %v223
  %v489 = vld [vmem:[%s480] ss:$9 sm:$0xff]
  %490 = vst [vmem:[#allocation1] sm:$0xff] %v225
  %v491 = vld [vmem:[%s480] ss:$9 sm:$0xff]
  %492 = vst [vmem:[#allocation1] sm:$0xff] %v227
  %v493 = vld [vmem:[%s480] ss:$9 sm:$0xff]
  %494 = vst [vmem:[#allocation1] sm:$0xff] %v229
  %v495 = vld [vmem:[%s480] ss:$9 sm:$0xff]
  %496 = vst [vmem:[#allocation1] sm:$0xff] %v231
  %v497 = vld [vmem:[%s480] ss:$9 sm:$0xff]
  %498 = vst [vmem:[#allocation1] sm:$0xff] %v233
  %v499 = vld [vmem:[%s480] ss:$9 sm:$0xff]
  %500 = vst [vmem:[#allocation1] sm:$0xff] %v235
  %v501 = vld [vmem:[%s480] ss:$9 sm:$0xff]
  %502 = vst [vmem:[#allocation1] sm:$0xff] %v237
  %v503 = vld [vmem:[%s480] ss:$9 sm:$0xff]
  %504 = vst [vmem:[#allocation1] sm:$0xff] %v239
  %v505 = vld [vmem:[%s480] ss:$9 sm:$0xff]
  %506 = vst [vmem:[#allocation1] sm:$0xff] %v241
  %v507 = vld [vmem:[%s480] ss:$9 sm:$0xff]
  %508 = vst [vmem:[#allocation1] sm:$0xff] %v243
  %v509 = vld [vmem:[%s480] ss:$9 sm:$0xff]
  %510 = vst [vmem:[#allocation1] sm:$0xff] %v245
  %v511 = vld [vmem:[%s480] ss:$9 sm:$0xff]
  %512 = vst [vmem:[#allocation1] sm:$0xff] %v247
  %v513 = vld [vmem:[%s480] ss:$9 sm:$0xff]
  %v531 = vadd.f32 %v47, %v481
  %v532 = vadd.f32 %v47, %v483
  %v533 = vadd.f32 %v47, %v485
  %v534 = vadd.f32 %v47, %v487
  %v535 = vadd.f32 %v47, %v489
  %v536 = vadd.f32 %v47, %v491
  %v537 = vadd.f32 %v47, %v493
  %v538 = vadd.f32 %v47, %v495
  %v539 = vadd.f32 %v47, %v497
  %v540 = vadd.f32 %v47, %v499
  %v541 = vadd.f32 %v47, %v501
  %v542 = vadd.f32 %v47, %v503
  %v543 = vadd.f32 %v47, %v505
  %v544 = vadd.f32 %v47, %v507
  %v545 = vadd.f32 %v47, %v509
  %v546 = vadd.f32 %v47, %v511
  %v547 = vadd.f32 %v47, %v513
  %vm548 = vcmask 57344
  %549 = vst.msk [vmem:[%s3 + $0x10] sm:$0x1] %vm548, %v531
  %550 = vst.msk [vmem:[%s3 + $0x28] sm:$0x1] %vm548, %v532
  %551 = vst.msk [vmem:[%s3 + $0x40] sm:$0x1] %vm548, %v533
  %552 = vst.msk [vmem:[%s3 + $0x58] sm:$0x1] %vm548, %v534
  %553 = vst.msk [vmem:[%s3 + $0x70] sm:$0x1] %vm548, %v535
  %554 = vst.msk [vmem:[%s3 + $0x88] sm:$0x1] %vm548, %v536
  %555 = vst.msk [vmem:[%s3 + $0xa0] sm:$0x1] %vm548, %v537
  %556 = vst.msk [vmem:[%s3 + $0xb8] sm:$0x1] %vm548, %v538
  %557 = vst.msk [vmem:[%s3 + $0xd0] sm:$0x1] %vm548, %v539
  %558 = vst.msk [vmem:[%s3 + $0xe8] sm:$0x1] %vm548, %v540
  %559 = vst.msk [vmem:[%s3 + $0x100] sm:$0x1] %vm548, %v541
  %560 = vst.msk [vmem:[%s3 + $0x118] sm:$0x1] %vm548, %v542
  %561 = vst.msk [vmem:[%s3 + $0x130] sm:$0x1] %vm548, %v543
  %562 = vst.msk [vmem:[%s3 + $0x148] sm:$0x1] %vm548, %v544
  %563 = vst.msk [vmem:[%s3 + $0x160] sm:$0x1] %vm548, %v545
  %564 = vst.msk [vmem:[%s3 + $0x178] sm:$0x1] %vm548, %v546
  %565 = vst.msk [vmem:[%s3 + $0x190] sm:$0x1] %vm548, %v547
  // Predicated region
  $region14: #{tpu_custom_call.1} parent=0 // pred_check
    _
  $region15: #{tpu_custom_call.1} parent=0 // pred_check_branch
    %567 = sbr.rel (0) target = $region17
  $region16: #{tpu_custom_call.1} parent=0 // pred_region
    _
  $region17: #{tpu_custom_call.1} parent=0 // pred_fallthru
    _
  // Predicated region
  $region18: #{tpu_custom_call.1} parent=0 // pred_check
    _
  $region19: #{tpu_custom_call.1} parent=0 // pred_check_branch
    %569 = sbr.rel (0) target = $region21
  $region20: #{tpu_custom_call.1} parent=0 // pred_region
    _
  $region21: #{tpu_custom_call.1} parent=0 // pred_fallthru
    _

</llo_original>
